<compile_context>
chip_gen: v6e
topology: v6e:2x2x1
jax: 0.10.0
libtpu: 0.0.40
codegen_flags: <defaults>
</compile_context>

<pallas_src>
import functools

import jax
import jax.numpy as jnp
from jax.experimental import pallas as pl
from jax.experimental.pallas import tpu as pltpu

_LANES = 128


def _round_up(x, m):
    return ((x + m - 1) // m) * m


def _sublane_multiple(dtype):
    """Row multiple that keeps blocks aligned to the dtype's sublane packing."""
    itemsize = jnp.dtype(dtype).itemsize
    return 8 * max(1, 4 // itemsize)  # f32 -> 8, bf16 -> 16, int8/fp8 -> 32


def _max_tile_rows():
    """Per-generation row budget (rows of 128 f32 lanes) for one block.

    Chosen so 2x(in) + 2x(out) double-buffered blocks fit the scoped-VMEM
    default on every generation without raising vmem_limit_bytes:
      v5e (16 MiB default): 4096 rows -> 2 MiB blocks, 8 MiB total
      v6e/v7x (32 MiB default): 8192 rows -> 4 MiB blocks, 16 MiB total
    """
    try:
        kind = jax.devices()[0].device_kind.lower()
    except Exception:  # pragma: no cover - conservative default
        return 4096
    if "v5 lite" in kind or "v5e" in kind or "v5lite" in kind:
        return 4096
    return 8192  # v6e, v7x and newer


def _pick_tile_rows(rows, max_rows, row_mult):
    """Pick a row-tile: big enough to amortize per-step overhead, small enough
    to keep >= ~8 grid steps for medium/large inputs (megacore + pipelining)."""
    if rows * _LANES * 4 <= 2 * 1024 * 1024:
        # <= 2 MiB of f32: a single block; launch overhead dominates anyway.
        return _round_up(rows, row_mult)
    tile = _round_up(pl.cdiv(rows, 8), row_mult)   # aim for ~8 grid steps
    tile = max(row_mult * 64, min(max_rows, tile))  # >= 512 rows, <= budget
    return _round_up(tile, row_mult)


def _loss_adaptive_kernel(diff_ref, out_ref, *, scale):
    """out = 1 + scale * diff**2, computed in f32, stored in the input dtype."""
    d = diff_ref[...].astype(jnp.float32)
    out_ref[...] = (d * d * jnp.float32(scale) + jnp.float32(1.0)).astype(out_ref.dtype)


@functools.partial(jax.jit, static_argnames=("epoch",))
def loss_adaptive_forward(difference, epoch):
    """JAX/Pallas equivalent of Loss_Adaptive(weight ~ difference).forward.

    Args:
      difference: float array (any shape, e.g. NCHW), same shape/dtype as the
                  module's `weight`.
      epoch:      static Python int (gates the update, as in the module).
    Returns:
      Array with the same shape and dtype as `difference` (the updated res_w).
    """
    # TODO(synk): epoch must be a static Python int (the PyTorch module also
    # branches on it at Python level); a traced epoch scalar is not supported.
    orig_shape = difference.shape
    out_dtype = difference.dtype
    n = int(difference.size)

    if int(epoch) < 2:
        # Module returns the never-updated ones tensor: no HBM read at all.
        return jnp.ones(orig_shape, out_dtype)

    scale = 1e-20 / float(n)

    if n % _LANES != 0:
        # Ragged fallback (rare for NCHW): a single fused XLA pass is already
        # at the HBM roofline; any pad/slice + kernel combo adds full extra
        # HBM round-trips and can only be slower.
        d = difference.astype(jnp.float32)
        return (d * d * jnp.float32(scale) + jnp.float32(1.0)).astype(out_dtype)

    # Lane-aligned hot path: free (rows, 128) view under jit.
    diff2d = difference.reshape(-1, _LANES)
    rows = diff2d.shape[0]
    row_mult = _sublane_multiple(out_dtype)
    tile_rows = _pick_tile_rows(rows, _max_tile_rows(), row_mult)
    grid = (pl.cdiv(rows, tile_rows),)

    out2d = pl.pallas_call(
        functools.partial(_loss_adaptive_kernel, scale=scale),
        out_shape=jax.ShapeDtypeStruct((rows, _LANES), out_dtype),
        grid=grid,
        in_specs=[pl.BlockSpec((tile_rows, _LANES), lambda i: (i, 0))],
        out_specs=pl.BlockSpec((tile_rows, _LANES), lambda i: (i, 0)),
        compiler_params=pltpu.CompilerParams(
            dimension_semantics=("parallel",),
        ),
    )(diff2d)

    return out2d.reshape(orig_shape)


def _reference(difference, epoch):
    d32 = difference.astype(jnp.float32)
    n = d32.size
    if epoch >= 2:
        res = 1.0 + 1e-20 * (d32 * d32 / n)
    else:
        res = jnp.ones_like(d32)
    return res.astype(difference.dtype)


if __name__ == "__main__":
    key = jax.random.PRNGKey(0)
    # weight / difference share a shape; small NCHW-like shape.
    difference = jax.random.normal(key, (2, 4, 16, 16), dtype=jnp.float32)

    # epoch >= 2 path (update applied, lane-aligned Pallas kernel)
    out_hi = jax.block_until_ready(loss_adaptive_forward(difference, epoch=3))
    ref_hi = _reference(difference, 3)
    assert out_hi.shape == difference.shape
    assert out_hi.dtype == difference.dtype
    assert jnp.allclose(out_hi, ref_hi, atol=0.0, rtol=1e-6)

    # epoch < 2 path (returns ones, no kernel launch)
    out_lo = jax.block_until_ready(loss_adaptive_forward(difference, epoch=0))
    assert jnp.allclose(out_lo, _reference(difference, 0), atol=0.0, rtol=0.0)

    # bf16 input: cast happens in-kernel, output dtype preserved.
    diff_bf16 = difference.astype(jnp.bfloat16)
    out_bf = jax.block_until_ready(loss_adaptive_forward(diff_bf16, epoch=2))
    assert out_bf.dtype == jnp.bfloat16
    assert jnp.allclose(out_bf.astype(jnp.float32),
                        _reference(diff_bf16, 2).astype(jnp.float32),
                        atol=0.0, rtol=1e-2)

    # ragged-size fallback path (single fused XLA pass) still correct
    ragged = jax.random.normal(jax.random.PRNGKey(1), (3, 5, 7), dtype=jnp.float32)
    out_r = jax.block_until_ready(loss_adaptive_forward(ragged, epoch=2))
    assert jnp.allclose(out_r, _reference(ragged, 2), atol=0.0, rtol=1e-6)

    print("KERNEL_OK")
</pallas_src>

<mosaic_0001>
module attributes {stable_mosaic.version = 11 : i64} {
  func.func @_loss_adaptive_kernel(%arg0: i32, %arg1: memref<16x128xf32, #tpu.memory_space<vmem>>, %arg2: memref<16x128xf32, #tpu.memory_space<vmem>>) attributes {dimension_semantics = [#tpu.dimension_semantics<parallel>], iteration_bounds = array<i64: 1>, scalar_prefetch = 0 : i64, scratch_operands = 0 : i64, tpu.core_type = #tpu.core_type<tc>, window_params = [{transform_indices = @transform_0, window_bounds = array<i64: 16, 128>}, {transform_indices = @transform_1, window_bounds = array<i64: 16, 128>}]} {
    %c0 = arith.constant 0 : index
    %c0_0 = arith.constant 0 : index
    %0 = vector.load %arg1[%c0, %c0_0] : memref<16x128xf32, #tpu.memory_space<vmem>>, vector<16x128xf32>
    %1 = arith.mulf %0, %0 : vector<16x128xf32>
    %cst = arith.constant 4.88281235E-24 : f32
    %2 = vector.broadcast %cst : f32 to vector<16x128xf32>
    %3 = arith.mulf %1, %2 : vector<16x128xf32>
    %cst_1 = arith.constant 1.000000e+00 : f32
    %4 = vector.broadcast %cst_1 : f32 to vector<16x128xf32>
    %5 = arith.addf %3, %4 : vector<16x128xf32>
    %c0_2 = arith.constant 0 : index
    %c0_3 = arith.constant 0 : index
    %6 = vector.load %arg2[%c0_2, %c0_3] : memref<16x128xf32, #tpu.memory_space<vmem>>, vector<16x128xf32>
    tpu.vector_store %arg2[%c0_2, %c0_3], %5 {strides = array<i32>} : memref<16x128xf32, #tpu.memory_space<vmem>>, vector<16x128xf32>,
    return
  }
  func.func @transform_0(%arg0: i32) -> (i32, i32) {
    %c0_i32 = arith.constant 0 : i32
    %c0_i32_0 = arith.constant 0 : i32
    return %arg0, %c0_i32 : i32, i32
  }
  func.func @transform_1(%arg0: i32) -> (i32, i32) {
    %c0_i32 = arith.constant 0 : i32
    %c0_i32_0 = arith.constant 0 : i32
    return %arg0, %c0_i32 : i32, i32
  }
}

</mosaic_0001>

<llo_original>
// kernel: loss_adaptive_forward.1
$region0: #{loss_adaptive_forward.1}
  #allocation0 [shape = 'u32[]', space=smem, size = 0x4, offset = 0x4, fixed_abs, tag = 'smem constant byte address 0x4 - core index']
  #allocation1 [shape = 'u32[144,128]{1,0:T(1,128)}', space=vmem, size = 0x12000, scoped, tag = 'internal scratch']
  %s0 = inlined_call_operand.vmem [shape: f32[16,128], index: 0, kind: input, shape index: {}]
  %s1 = inlined_call_operand.vmem [shape: f32[16,128], index: 1, kind: output, shape index: {}]
  %s2 = sld [smem:[#allocation0]]
  $region14: #{loss_adaptive_forward.1} parent=0
    _
  %s4 = ssub.s32 1, %s2
  %s5 = scalar_select 0, %s4, %s2
  // Predicated region
  $region2: #{loss_adaptive_forward.1} parent=0 // pred_check
    _
  $region3: #{loss_adaptive_forward.1} parent=0 // pred_check_branch
    %7 = sbr.rel (0) target = $region5
  $region4: #{loss_adaptive_forward.1} parent=0 // pred_region
    _
  $region5: #{loss_adaptive_forward.1} parent=0 // pred_fallthru
    _
  %v8 = vld [vmem:[%s0] sm:$0xff]
  %v9 = vld [vmem:[%s0 + $0x8] sm:$0xff]
  %v10 = vmul.f32 %v8, %v8
  %v11 = vmul.f32 %v9, %v9
  %v12 = vmul.f32 %v10, 4.8828123e-24
  %v13 = vmul.f32 %v11, 4.8828123e-24
  %v14 = vadd.f32 %v12, 1.0
  %v15 = vadd.f32 %v13, 1.0
  %16 = vst [vmem:[%s1] sm:$0xff] %v14
  %17 = vst [vmem:[%s1 + $0x8] sm:$0xff] %v15
  // Predicated region
  $region6: #{loss_adaptive_forward.1} parent=0 // pred_check
    _
  $region7: #{loss_adaptive_forward.1} parent=0 // pred_check_branch
    %19 = sbr.rel (0) target = $region9
  $region8: #{loss_adaptive_forward.1} parent=0 // pred_region
    _
  $region9: #{loss_adaptive_forward.1} parent=0 // pred_fallthru
    _
  // Predicated region
  $region10: #{loss_adaptive_forward.1} parent=0 // pred_check
    _
  $region11: #{loss_adaptive_forward.1} parent=0 // pred_check_branch
    %21 = sbr.rel (0) target = $region13
  $region12: #{loss_adaptive_forward.1} parent=0 // pred_region
    _
  $region13: #{loss_adaptive_forward.1} parent=0 // pred_fallthru
    _

</llo_original>
